<compile_context>
chip_gen: v7x
topology: tpu7x:2x2x1
jax: 0.10.0
libtpu: 0.0.40
codegen_flags: <defaults>
</compile_context>

<pallas_src>
import jax
import jax.numpy as jnp
from jax.experimental import pallas as pl
from jax.experimental.pallas import tpu as pltpu


def _round_up(x: int, m: int) -> int:
    return (x + m - 1) // m * m


def _make_masked_linear_kernel(cast_to_bf16: bool):
    def kernel(x_ref, w_ref, wm_ref, b_ref, bm_ref, o_ref, acc_ref):
        k = pl.program_id(2)

        @pl.when(k == 0)
        def _init():
            acc_ref[...] = jnp.zeros_like(acc_ref)

        # Apply the (binary) pruning mask; int8 mask upcast in-register.
        w = w_ref[...] * wm_ref[...].astype(w_ref.dtype)
        x = x_ref[...]
        if cast_to_bf16:
            # bf16 operands for the MXU (full rate on v6e/v7x); f32 accumulate.
            x = x.astype(jnp.bfloat16)
            w = w.astype(jnp.bfloat16)

        # x: [tm, tk], w: [tn, tk] -> contract K on both sides, no transpose.
        acc_ref[...] += jax.lax.dot_general(
            x, w,
            dimension_numbers=(((1,), (1,)), ((), ())),
            preferred_element_type=jnp.float32,
        )

        @pl.when(k == pl.num_programs(2) - 1)
        def _finalize():
            b = b_ref[...] * bm_ref[...]          # masked bias, f32, [1, tn]
            o_ref[...] = (acc_ref[...] + b).astype(o_ref.dtype)

    return kernel


def pruner_wrapped_linear(x, weight, weight_mask, bias=None, bias_mask=None,
                          *, tm=256, tn=256, tk=512, use_bf16_matmul=True):
    """Equivalent of PrunerModuleWrapper(nn.Linear(K, N)).forward(x)."""
    N, K = weight.shape
    lead = x.shape[:-1]
    x2 = x.reshape(-1, K)
    M = x2.shape[0]

    # Lane/sublane-friendly padded sizes: N and K to multiples of 128 (lane-
    # dense output stores, aligned weight tiles), M to the 8-sublane multiple.
    Mp = _round_up(M, 8)
    Kp = _round_up(K, 128)
    Np = _round_up(N, 128)

    # Clamp tiles to the padded problem, then round padded dims to whole tiles.
    # Default tile set (256, 256, 512) uses ~3 MiB of VMEM including double
    # buffering -> comfortably inside v7x's 64 MiB physical / 32 MiB scoped.
    tm = min(tm, Mp)
    tn = min(tn, Np)
    tk = min(tk, Kp)
    Mp = _round_up(Mp, tm)
    Np = _round_up(Np, tn)
    Kp = _round_up(Kp, tk)

    out_dtype = x.dtype

    # Zero-padded operands.  NNI pruning masks are binary, so the weight mask
    # is carried as int8 (1/4 the bytes of an f32 mask).
    x_p = jnp.zeros((Mp, Kp), x2.dtype).at[:M, :K].set(x2)
    w_p = jnp.zeros((Np, Kp), weight.dtype).at[:N, :K].set(weight)
    wm_p = jnp.zeros((Np, Kp), jnp.int8).at[:N, :K].set(
        (weight_mask != 0).astype(jnp.int8))

    if bias is None:
        b_p = jnp.zeros((1, Np), jnp.float32)
        bm_p = jnp.zeros((1, Np), jnp.float32)
    else:
        b_p = jnp.zeros((1, Np), jnp.float32).at[0, :N].set(bias.astype(jnp.float32))
        bm_p = jnp.zeros((1, Np), jnp.float32).at[0, :N].set(
            bias_mask.astype(jnp.float32))

    grid = (Mp // tm, Np // tn, Kp // tk)
    cast_to_bf16 = bool(use_bf16_matmul) and x2.dtype == jnp.float32

    out_p = pl.pallas_call(
        _make_masked_linear_kernel(cast_to_bf16),
        out_shape=jax.ShapeDtypeStruct((Mp, Np), out_dtype),
        grid_spec=pltpu.PrefetchScalarGridSpec(
            num_scalar_prefetch=0,
            grid=grid,
            in_specs=[
                pl.BlockSpec((tm, tk), lambda i, j, k: (i, k)),   # x
                pl.BlockSpec((tn, tk), lambda i, j, k: (j, k)),   # weight
                pl.BlockSpec((tn, tk), lambda i, j, k: (j, k)),   # weight_mask (i8)
                pl.BlockSpec((1, tn), lambda i, j, k: (0, j)),    # bias
                pl.BlockSpec((1, tn), lambda i, j, k: (0, j)),    # bias_mask
            ],
            out_specs=pl.BlockSpec((tm, tn), lambda i, j, k: (i, j)),
            scratch_shapes=[pltpu.VMEM((tm, tn), jnp.float32)],
        ),
        compiler_params=pltpu.CompilerParams(
            dimension_semantics=("parallel", "parallel", "arbitrary"),
            # Explicit, conservative scoped-VMEM limit (v7x only has 64 MiB
            # physical); the default tile set needs ~3 MiB.
            vmem_limit_bytes=32 * 1024 * 1024,
        ),
    )(x_p, w_p, wm_p, b_p, bm_p)

    return out_p[:M, :N].reshape(*lead, N)


if __name__ == "__main__":
    key = jax.random.PRNGKey(0)
    kx, kw, kb = jax.random.split(key, 3)

    B, S, H_IN, H_OUT = 2, 8, 32, 32

    # Deterministic "module" parameters (synthetic, no checkpoint load).
    x = jax.random.normal(kx, (B, S, H_IN), dtype=jnp.float32)
    weight = jax.random.normal(kw, (H_OUT, H_IN), dtype=jnp.float32) * 0.1
    bias = jax.random.normal(kb, (H_OUT,), dtype=jnp.float32) * 0.1

    # Wrapper buffers: masks start as ones (as in __init__), then a synthetic
    # structured pruning pattern (prune every other output channel).
    weight_mask = jnp.ones_like(weight) * (jnp.arange(H_OUT)[:, None] % 2).astype(jnp.float32)
    bias_mask = jnp.ones_like(bias) * (jnp.arange(H_OUT) % 2).astype(jnp.float32)

    fwd = jax.jit(pruner_wrapped_linear)
    out = jax.block_until_ready(fwd(x, weight, weight_mask, bias, bias_mask))
    assert out.shape == (B, S, H_OUT)

    # Reference with the same arithmetic as the kernel (bf16 operands, f32 acc).
    w_masked = weight * weight_mask
    x2 = x.reshape(-1, H_IN)
    ref_bf16 = (
        jax.lax.dot_general(
            x2.astype(jnp.bfloat16), w_masked.astype(jnp.bfloat16),
            dimension_numbers=(((1,), (1,)), ((), ())),
            preferred_element_type=jnp.float32,
        ).reshape(B, S, H_OUT)
        + bias * bias_mask
    )
    assert jnp.allclose(out, ref_bf16, atol=1e-4, rtol=1e-4), "mismatch vs bf16 reference"

    # Full-f32 wrapper semantics (loose tolerance: kernel uses bf16 MXU operands).
    ref_f32 = x @ w_masked.T + bias * bias_mask
    assert jnp.allclose(out, ref_f32, atol=3e-2, rtol=3e-2), "mismatch vs f32 reference"

    print("KERNEL_OK")
</pallas_src>

<mosaic_0001>
module attributes {stable_mosaic.version = 11 : i64} {
  func.func @kernel(%arg0: i32, %arg1: i32, %arg2: i32, %arg3: memref<16x128xf32, #tpu.memory_space<vmem>>, %arg4: memref<128x128xf32, #tpu.memory_space<vmem>>, %arg5: memref<128x128xi8, #tpu.memory_space<vmem>>, %arg6: memref<1x128xf32, #tpu.memory_space<vmem>>, %arg7: memref<1x128xf32, #tpu.memory_space<vmem>>, %arg8: memref<16x128xf32, #tpu.memory_space<vmem>>, %arg9: memref<16x128xf32, #tpu.memory_space<vmem>>) attributes {dimension_semantics = [#tpu.dimension_semantics<parallel>, #tpu.dimension_semantics<parallel>, #tpu.dimension_semantics<arbitrary>], iteration_bounds = array<i64: 1, 1, 1>, scalar_prefetch = 0 : i64, scratch_operands = 1 : i64, tpu.core_type = #tpu.core_type<tc>, window_params = [{transform_indices = @transform_0, window_bounds = array<i64: 16, 128>}, {transform_indices = @transform_1, window_bounds = array<i64: 128, 128>}, {transform_indices = @transform_2, window_bounds = array<i64: 128, 128>}, {transform_indices = @transform_3, window_bounds = array<i64: 1, 128>}, {transform_indices = @transform_4, window_bounds = array<i64: 1, 128>}, {transform_indices = @transform_5, window_bounds = array<i64: 16, 128>}]} {
    %c0_i32 = arith.constant 0 : i32
    %0 = arith.cmpi eq, %arg2, %c0_i32 : i32
    %1 = arith.extui %0 : i1 to i32
    %c0_i32_0 = arith.constant 0 : i32
    %2 = arith.cmpi ne, %1, %c0_i32_0 : i32
    scf.if %2 {
      %cst_12 = arith.constant 0.000000e+00 : f32
      %17 = vector.broadcast %cst_12 : f32 to vector<16x128xf32>
      %c0_13 = arith.constant 0 : index
      %c0_14 = arith.constant 0 : index
      %18 = vector.load %arg9[%c0_13, %c0_14] : memref<16x128xf32, #tpu.memory_space<vmem>>, vector<16x128xf32>
      tpu.vector_store %arg9[%c0_13, %c0_14], %17 {strides = array<i32>} : memref<16x128xf32, #tpu.memory_space<vmem>>, vector<16x128xf32>,
    } else {
    }
    %c0 = arith.constant 0 : index
    %c0_1 = arith.constant 0 : index
    %3 = vector.load %arg4[%c0, %c0_1] : memref<128x128xf32, #tpu.memory_space<vmem>>, vector<128x128xf32>
    %c0_2 = arith.constant 0 : index
    %c0_3 = arith.constant 0 : index
    %4 = vector.load %arg5[%c0_2, %c0_3] : memref<128x128xi8, #tpu.memory_space<vmem>>, vector<128x128xi8>
    %5 = arith.sitofp %4 : vector<128x128xi8> to vector<128x128xf32>
    %6 = arith.mulf %3, %5 : vector<128x128xf32>
    %c0_4 = arith.constant 0 : index
    %c0_5 = arith.constant 0 : index
    %7 = vector.load %arg3[%c0_4, %c0_5] : memref<16x128xf32, #tpu.memory_space<vmem>>, vector<16x128xf32>
    %8 = arith.truncf %7 : vector<16x128xf32> to vector<16x128xbf16>
    %9 = arith.truncf %6 : vector<128x128xf32> to vector<128x128xbf16>
    %c0_6 = arith.constant 0 : index
    %c0_7 = arith.constant 0 : index
    %10 = vector.load %arg9[%c0_6, %c0_7] : memref<16x128xf32, #tpu.memory_space<vmem>>, vector<16x128xf32>
    %cst = arith.constant dense<0.000000e+00> : vector<16x128xf32>
    %11 = tpu.matmul %8, %9, %cst {dimension_numbers = #tpu.dot_dimension_numbers<[1], [1], [0], [0], [0, 0, 1, 0], [], []>} : vector<16x128xbf16>, vector<128x128xbf16>, vector<16x128xf32> -> vector<16x128xf32>
    %12 = arith.addf %10, %11 : vector<16x128xf32>
    %c0_8 = arith.constant 0 : index
    %c0_9 = arith.constant 0 : index
    %13 = vector.load %arg9[%c0_8, %c0_9] : memref<16x128xf32, #tpu.memory_space<vmem>>, vector<16x128xf32>
    tpu.vector_store %arg9[%c0_8, %c0_9], %12 {strides = array<i32>} : memref<16x128xf32, #tpu.memory_space<vmem>>, vector<16x128xf32>,
    %c0_i32_10 = arith.constant 0 : i32
    %14 = arith.cmpi eq, %arg2, %c0_i32_10 : i32
    %15 = arith.extui %14 : i1 to i32
    %c0_i32_11 = arith.constant 0 : i32
    %16 = arith.cmpi ne, %15, %c0_i32_11 : i32
    scf.if %16 {
      %c0_12 = arith.constant 0 : index
      %c0_13 = arith.constant 0 : index
      %17 = vector.load %arg6[%c0_12, %c0_13] : memref<1x128xf32, #tpu.memory_space<vmem>>, vector<1x128xf32>
      %c0_14 = arith.constant 0 : index
      %c0_15 = arith.constant 0 : index
      %18 = vector.load %arg7[%c0_14, %c0_15] : memref<1x128xf32, #tpu.memory_space<vmem>>, vector<1x128xf32>
      %19 = arith.mulf %17, %18 : vector<1x128xf32>
      %c0_16 = arith.constant 0 : index
      %c0_17 = arith.constant 0 : index
      %20 = vector.load %arg9[%c0_16, %c0_17] : memref<16x128xf32, #tpu.memory_space<vmem>>, vector<16x128xf32>
      %21 = vector.broadcast %19 : vector<1x128xf32> to vector<16x128xf32>
      %22 = arith.addf %20, %21 : vector<16x128xf32>
      %c0_18 = arith.constant 0 : index
      %c0_19 = arith.constant 0 : index
      %23 = vector.load %arg8[%c0_18, %c0_19] : memref<16x128xf32, #tpu.memory_space<vmem>>, vector<16x128xf32>
      tpu.vector_store %arg8[%c0_18, %c0_19], %22 {strides = array<i32>} : memref<16x128xf32, #tpu.memory_space<vmem>>, vector<16x128xf32>,
    } else {
    }
    return
  }
  func.func @transform_0(%arg0: i32, %arg1: i32, %arg2: i32) -> (i32, i32) {
    %c0_i32 = arith.constant 0 : i32
    return %arg0, %arg2 : i32, i32
  }
  func.func @transform_1(%arg0: i32, %arg1: i32, %arg2: i32) -> (i32, i32) {
    %c0_i32 = arith.constant 0 : i32
    return %arg1, %arg2 : i32, i32
  }
  func.func @transform_2(%arg0: i32, %arg1: i32, %arg2: i32) -> (i32, i32) {
    %c0_i32 = arith.constant 0 : i32
    return %arg1, %arg2 : i32, i32
  }
  func.func @transform_3(%arg0: i32, %arg1: i32, %arg2: i32) -> (i32, i32) {
    %c0_i32 = arith.constant 0 : i32
    %c0_i32_0 = arith.constant 0 : i32
    return %c0_i32, %arg1 : i32, i32
  }
  func.func @transform_4(%arg0: i32, %arg1: i32, %arg2: i32) -> (i32, i32) {
    %c0_i32 = arith.constant 0 : i32
    %c0_i32_0 = arith.constant 0 : i32
    return %c0_i32, %arg1 : i32, i32
  }
  func.func @transform_5(%arg0: i32, %arg1: i32, %arg2: i32) -> (i32, i32) {
    %c0_i32 = arith.constant 0 : i32
    return %arg0, %arg1 : i32, i32
  }
}

</mosaic_0001>

<llo_original>
// kernel: pruner_wrapped_linear.1
$region0: #{pruner_wrapped_linear.1}
  #allocation0 [shape = 'u32[]', space=smem, size = 0x4, offset = 0x4, fixed_abs, tag = 'smem constant byte address 0x4 - core index']
  #allocation1 [shape = 'u32[144,128]{1,0:T(1,128)}', space=vmem, size = 0x12000, scoped, tag = 'internal scratch']
  #allocation2 [shape = 'f32[16,128]{1,0:T(8,128)}', space=vmem, size = 0x2000, scoped, tag = 'scratch operand']
  %s0 = inlined_call_operand.vmem [shape: f32[16,128], index: 0, kind: input, shape index: {}]
  %s1 = inlined_call_operand.vmem [shape: f32[128,128], index: 1, kind: input, shape index: {}]
  %s2 = inlined_call_operand.vmem [shape: s8[128,128], index: 2, kind: input, shape index: {}]
  %s3 = inlined_call_operand.vmem [shape: f32[1,128], index: 3, kind: input, shape index: {}]
  %s4 = inlined_call_operand.vmem [shape: f32[1,128], index: 4, kind: input, shape index: {}]
  %s5 = inlined_call_operand.vmem [shape: f32[16,128], index: 5, kind: output, shape index: {}]
  %s6 = sld [smem:[#allocation0]]
  $region38: #{pruner_wrapped_linear.1} parent=0
    _
  %s8 = ssub.s32 1, %s6
  %s9 = scalar_select 0, %s8, %s6
  // Predicated region
  $region2: #{pruner_wrapped_linear.1} parent=0 // pred_check
    _
  $region3: #{pruner_wrapped_linear.1} parent=0 // pred_check_branch
    %11 = sbr.rel (0) target = $region5
  $region4: #{pruner_wrapped_linear.1} parent=0 // pred_region
    _
  $region5: #{pruner_wrapped_linear.1} parent=0 // pred_fallthru
    _
  // Predicated region
  $region6: #{pruner_wrapped_linear.1} parent=0 // pred_check
    _
  $region7: #{pruner_wrapped_linear.1} parent=0 // pred_check_branch
    %13 = sbr.rel (0) target = $region9
  $region8: #{pruner_wrapped_linear.1} parent=0 // pred_region
    _
  $region9: #{pruner_wrapped_linear.1} parent=0 // pred_fallthru
    _
  // Predicated region
  $region10: #{pruner_wrapped_linear.1} parent=0 // pred_check
    _
  $region11: #{pruner_wrapped_linear.1} parent=0 // pred_check_branch
    %15 = sbr.rel (0) target = $region13
  $region12: #{pruner_wrapped_linear.1} parent=0 // pred_region
    _
  $region13: #{pruner_wrapped_linear.1} parent=0 // pred_fallthru
    _
  // Predicated region
  $region14: #{pruner_wrapped_linear.1} parent=0 // pred_check
    _
  $region15: #{pruner_wrapped_linear.1} parent=0 // pred_check_branch
    %17 = sbr.rel (0) target = $region17
  $region16: #{pruner_wrapped_linear.1} parent=0 // pred_region
    _
  $region17: #{pruner_wrapped_linear.1} parent=0 // pred_fallthru
    _
  // Predicated region
  $region18: #{pruner_wrapped_linear.1} parent=0 // pred_check
    _
  $region19: #{pruner_wrapped_linear.1} parent=0 // pred_check_branch
    %19 = sbr.rel (0) target = $region21
  $region20: #{pruner_wrapped_linear.1} parent=0 // pred_region
    _
  $region21: #{pruner_wrapped_linear.1} parent=0 // pred_fallthru
    _
  %p21 = scmp.eq.s32.totalorder 0, 0
  // Predicated region
  $region22: #{pruner_wrapped_linear.1} parent=0 // pred_check
    %p22 = pneg %p21
  $region23: #{pruner_wrapped_linear.1} parent=0 // pred_check_branch
    %24 = sbr.rel (%p22) target = $region25
  $region24: #{pruner_wrapped_linear.1} parent=0 // pred_region
    %25 = vst [vmem:[#allocation2] sm:$0xff] 0.0
    %26 = vst [vmem:[#allocation2 + $0x8] sm:$0xff] 0.0
  $region25: #{pruner_wrapped_linear.1} parent=0 // pred_fallthru
    _
  %v27 = vld [vmem:[%s1] sm:$0xff]
  %v28 = vld [vmem:[%s1 + $0x8] sm:$0xff]
  %v29 = vld [vmem:[%s1 + $0x10] sm:$0xff]
  %v30 = vld [vmem:[%s1 + $0x18] sm:$0xff]
  %v31 = vld [vmem:[%s1 + $0x20] sm:$0xff]
  %v32 = vld [vmem:[%s1 + $0x28] sm:$0xff]
  %v33 = vld [vmem:[%s1 + $0x30] sm:$0xff]
  %v34 = vld [vmem:[%s1 + $0x38] sm:$0xff]
  %v35 = vld [vmem:[%s1 + $0x40] sm:$0xff]
  %v36 = vld [vmem:[%s1 + $0x48] sm:$0xff]
  %v37 = vld [vmem:[%s1 + $0x50] sm:$0xff]
  %v38 = vld [vmem:[%s1 + $0x58] sm:$0xff]
  %v39 = vld [vmem:[%s1 + $0x60] sm:$0xff]
  %v40 = vld [vmem:[%s1 + $0x68] sm:$0xff]
  %v41 = vld [vmem:[%s1 + $0x70] sm:$0xff]
  %v42 = vld [vmem:[%s1 + $0x78] sm:$0xff]
  %v43 = vld [vmem:[%s2] sm:$0xff]
  %v44 = vld [vmem:[%s2 + $0x8] sm:$0xff]
  %v45 = vld [vmem:[%s2 + $0x10] sm:$0xff]
  %v46 = vld [vmem:[%s2 + $0x18] sm:$0xff]
  %v47 = vunpack.c.0.s8 %v43
  %v48 = vunpack.c.1.s8 %v43
  %v49 = vunpack.c.2.s8 %v43
  %v50 = vunpack.c.3.s8 %v43
  %v51 = vunpack.c.0.s8 %v44
  %v52 = vunpack.c.1.s8 %v44
  %v53 = vunpack.c.2.s8 %v44
  %v54 = vunpack.c.3.s8 %v44
  %v55 = vunpack.c.0.s8 %v45
  %v56 = vunpack.c.1.s8 %v45
  %v57 = vunpack.c.2.s8 %v45
  %v58 = vunpack.c.3.s8 %v45
  %v59 = vunpack.c.0.s8 %v46
  %v60 = vunpack.c.1.s8 %v46
  %v61 = vunpack.c.2.s8 %v46
  %v62 = vunpack.c.3.s8 %v46
  %v63 = vcvt.s32.f32 %v47
  %v64 = vcvt.s32.f32 %v48
  %v65 = vcvt.s32.f32 %v49
  %v66 = vcvt.s32.f32 %v50
  %v67 = vcvt.s32.f32 %v51
  %v68 = vcvt.s32.f32 %v52
  %v69 = vcvt.s32.f32 %v53
  %v70 = vcvt.s32.f32 %v54
  %v71 = vcvt.s32.f32 %v55
  %v72 = vcvt.s32.f32 %v56
  %v73 = vcvt.s32.f32 %v57
  %v74 = vcvt.s32.f32 %v58
  %v75 = vcvt.s32.f32 %v59
  %v76 = vcvt.s32.f32 %v60
  %v77 = vcvt.s32.f32 %v61
  %v78 = vcvt.s32.f32 %v62
  %v79 = vmul.f32 %v27, %v63
  %v80 = vmul.f32 %v28, %v64
  %v81 = vmul.f32 %v29, %v65
  %v82 = vmul.f32 %v30, %v66
  %v83 = vmul.f32 %v31, %v67
  %v84 = vmul.f32 %v32, %v68
  %v85 = vmul.f32 %v33, %v69
  %v86 = vmul.f32 %v34, %v70
  %v87 = vmul.f32 %v35, %v71
  %v88 = vmul.f32 %v36, %v72
  %v89 = vmul.f32 %v37, %v73
  %v90 = vmul.f32 %v38, %v74
  %v91 = vmul.f32 %v39, %v75
  %v92 = vmul.f32 %v40, %v76
  %v93 = vmul.f32 %v41, %v77
  %v94 = vmul.f32 %v42, %v78
  %v95 = vld [vmem:[%s0] sm:$0xff]
  %v96 = vld [vmem:[%s0 + $0x8] sm:$0xff]
  %v97 = vpack.c.bf16 %v96, %v95
  %v98 = vpack.c.bf16 %v80, %v79
  %v99 = vpack.c.bf16 %v82, %v81
  %v100 = vpack.c.bf16 %v84, %v83
  %v101 = vpack.c.bf16 %v86, %v85
  %v102 = vpack.c.bf16 %v88, %v87
  %v103 = vpack.c.bf16 %v90, %v89
  %v104 = vpack.c.bf16 %v92, %v91
  %v105 = vpack.c.bf16 %v94, %v93
  %v106 = vld [vmem:[#allocation2] sm:$0xff]
  %v107 = vld [vmem:[#allocation2 + $0x8] sm:$0xff]
  %108 = vmatprep.subr.bf16.mxu0 0
  %109 = vmatpush1.bf16.xpose.msra.mxu0 %v98
  %110 = vmatprep.subr.bf16.mxu0 0
  %111 = vmatpush1.bf16.xpose.msra.mxu0 %v99
  %112 = vmatprep.subr.bf16.mxu0 0
  %113 = vmatpush1.bf16.xpose.msra.mxu0 %v100
  %114 = vmatprep.subr.bf16.mxu0 0
  %115 = vmatpush1.bf16.xpose.msra.mxu0 %v101
  %116 = vmatprep.subr.bf16.mxu0 0
  %117 = vmatpush1.bf16.xpose.msra.mxu0 %v102
  %118 = vmatprep.subr.bf16.mxu0 0
  %119 = vmatpush1.bf16.xpose.msra.mxu0 %v103
  %120 = vmatprep.subr.bf16.mxu0 0
  %121 = vmatpush1.bf16.xpose.msra.mxu0 %v104
  %122 = vmatprep.subr.bf16.mxu0 0
  %123 = vmatpush1.bf16.xpose.msra.mxu0 %v105
  %124 = vmatprep.subr.bf16.mxu0 0
  %125 = vmatpush1.bf16.xpose.msra.mxu0 0
  %126 = vmatprep.subr.bf16.mxu0 0
  %127 = vmatpush1.bf16.xpose.msra.mxu0 0
  %128 = vmatprep.subr.bf16.mxu0 0
  %129 = vmatpush1.bf16.xpose.msra.mxu0 0
  %130 = vmatprep.subr.bf16.mxu0 0
  %131 = vmatpush1.bf16.xpose.msra.mxu0 0
  %132 = vmatprep.subr.bf16.mxu0 0
  %133 = vmatpush1.bf16.xpose.msra.mxu0 0
  %134 = vmatprep.subr.bf16.mxu0 0
  %135 = vmatpush1.bf16.xpose.msra.mxu0 0
  %136 = vmatprep.subr.bf16.mxu0 0
  %137 = vmatpush1.bf16.xpose.msra.mxu0 0
  %138 = vmatprep.subr.bf16.mxu0 0
  %139 = vmatpush1.bf16.xpose.msra.mxu0 0
  %140 = vmatprep.mubr.bf16.mxu0 0
  %141 = vmatmul.mubr.bf16.gmra.mrb[0].mxu0 %v97
  %v142 = vpop.f32.mrb[0].mxu0
  %v143 = vadd.f32 0.0, %v142
  %v144 = vpop.f32.mrb[0].mxu0
  %v145 = vpop.f32.mrb[0].mxu0
  %v146 = vadd.f32 0.0, %v145
  %v147 = vpop.f32.mrb[0].mxu0
  %148 = vdwg.mxu0
  %v149 = vadd.f32 %v106, %v143
  %v150 = vadd.f32 %v107, %v146
  %151 = vst [vmem:[#allocation2] sm:$0xff] %v149
  %152 = vst [vmem:[#allocation2 + $0x8] sm:$0xff] %v150
  // Predicated region
  $region26: #{pruner_wrapped_linear.1} parent=0 // pred_check
    %p153 = pneg %p21
  $region27: #{pruner_wrapped_linear.1} parent=0 // pred_check_branch
    %155 = sbr.rel (%p153) target = $region29
  $region28: #{pruner_wrapped_linear.1} parent=0 // pred_region
    %v156 = vld [vmem:[%s3] sm:$0x1]
    %v157 = vld [vmem:[%s4] sm:$0x1]
    %v158 = vmul.f32 %v156, %v157
    %v159 = vld [vmem:[#allocation2] sm:$0xff]
    %v160 = vld [vmem:[#allocation2 + $0x8] sm:$0xff]
    %v162 = vlaneseq
    %v163 = vshrl.u32 %v162, 7
    %v164 = vsub.s32 0, %v163
    %v165 = vrot.slane %v158, %v164
    %v167 = vadd.f32 %v159, %v165
    %v168 = vadd.f32 %v160, %v165
    %169 = vst [vmem:[%s5] sm:$0xff] %v167
    %170 = vst [vmem:[%s5 + $0x8] sm:$0xff] %v168
  $region29: #{pruner_wrapped_linear.1} parent=0 // pred_fallthru
    _
  // Predicated region
  $region30: #{pruner_wrapped_linear.1} parent=0 // pred_check
    _
  $region31: #{pruner_wrapped_linear.1} parent=0 // pred_check_branch
    %172 = sbr.rel (0) target = $region33
  $region32: #{pruner_wrapped_linear.1} parent=0 // pred_region
    _
  $region33: #{pruner_wrapped_linear.1} parent=0 // pred_fallthru
    _
  // Predicated region
  $region34: #{pruner_wrapped_linear.1} parent=0 // pred_check
    _
  $region35: #{pruner_wrapped_linear.1} parent=0 // pred_check_branch
    %174 = sbr.rel (0) target = $region37
  $region36: #{pruner_wrapped_linear.1} parent=0 // pred_region
    _
  $region37: #{pruner_wrapped_linear.1} parent=0 // pred_fallthru
    _

</llo_original>
